<compile_context>
chip_gen: v6e
topology: v6e:2x2x1
jax: 0.10.0
libtpu: 0.0.40
codegen_flags: <defaults>
</compile_context>

<pallas_src>
import jax
import jax.numpy as jnp
from jax.experimental import pallas as pl
from jax.experimental.pallas import tpu as pltpu


def _cdiv(a, b):
    return (a + b - 1) // b


def _round_up(a, b):
    return _cdiv(a, b) * b


def _gdl_sums_kernel(inp_ref, targ_ref, out_ref, acc_t_ref, acc_tx_ref, acc_x_ref):
    """Accumulate per-channel sum(t), sum(t*sigmoid(x)), sum(sigmoid(x))."""
    t_idx = pl.program_id(1)

    @pl.when(t_idx == 0)
    def _():
        acc_t_ref[...] = jnp.zeros_like(acc_t_ref)
        acc_tx_ref[...] = jnp.zeros_like(acc_tx_ref)
        acc_x_ref[...] = jnp.zeros_like(acc_x_ref)

    x = jax.nn.sigmoid(inp_ref[0].astype(jnp.float32))   # (C, hw_tile), lane-dense
    t = targ_ref[0].astype(jnp.float32)                  # (C, hw_tile)

    # Steady state: elementwise VPU adds only; cross-lane reduces are deferred.
    acc_t_ref[...] += t
    acc_x_ref[...] += x
    acc_tx_ref[...] += t * x

    @pl.when(t_idx == pl.num_programs(1) - 1)
    def _():
        sum_t = jnp.sum(acc_t_ref[...], axis=-1)     # (C,)
        sum_tx = jnp.sum(acc_tx_ref[...], axis=-1)   # (C,)
        sum_x = jnp.sum(acc_x_ref[...], axis=-1)     # (C,)
        out_ref[0] = jnp.stack([sum_t, sum_tx, sum_x], axis=0)  # (3, C), once per n


def _per_channel_partials(inp_ncs, targ_ncs, *, hw_tile):
    """(N, C, HW_pad) inputs -> (N, 3, C) per-sample partial sums (f32)."""
    N, C, HWp = inp_ncs.shape
    assert HWp % hw_tile == 0
    num_tiles = HWp // hw_tile

    return pl.pallas_call(
        _gdl_sums_kernel,
        out_shape=jax.ShapeDtypeStruct((N, 3, C), jnp.float32),
        grid_spec=pltpu.PrefetchScalarGridSpec(
            num_scalar_prefetch=0,
            grid=(N, num_tiles),
            in_specs=[
                pl.BlockSpec((1, C, hw_tile), lambda n, t: (n, 0, t)),
                pl.BlockSpec((1, C, hw_tile), lambda n, t: (n, 0, t)),
            ],
            out_specs=pl.BlockSpec((1, 3, C), lambda n, t: (n, 0, 0)),
            scratch_shapes=[
                pltpu.VMEM((C, hw_tile), jnp.float32),
                pltpu.VMEM((C, hw_tile), jnp.float32),
                pltpu.VMEM((C, hw_tile), jnp.float32),
            ],
        ),
        compiler_params=pltpu.CompilerParams(
            # N is independent (megacore-splittable on v7x: each core produces
            # its own (1, 3, C) partial, summed in the wrapper); the HW-tile
            # axis carries the resident accumulators so it stays "arbitrary".
            dimension_semantics=("parallel", "arbitrary"),
        ),
    )(inp_ncs, targ_ncs)


def generalized_dice_loss(inp, targ, *, max_hw_tile=32768, use_bfloat16=False):
    """inp, targ: (N, C, H, W) arrays (NCHW, matching the PyTorch module)."""
    N, C, H, W = inp.shape
    HW = H * W

    # Lane-dense tile of the spatial axis: multiple of 128, capped so that
    # 2 inputs x 2 pipeline buffers + 3 f32 accumulators stay at a few MiB of
    # VMEM (C=4, hw_tile=32768 f32 -> ~3.5 MiB total), well under the scoped
    # default on every generation (16 MiB v5e, 32 MiB v6e/v7x).
    num_tiles = max(1, _cdiv(HW, max_hw_tile))
    hw_tile = _round_up(_cdiv(HW, num_tiles), 128)
    HW_pad = hw_tile * num_tiles

    # Free, contiguous reshape (no transpose / extra HBM pass).
    inp_r = inp.reshape(N, C, HW)
    targ_r = targ.reshape(N, C, HW)
    if HW_pad != HW:
        pad = HW_pad - HW
        # Pad inp with a large negative (sigmoid(-1e30) == 0) and targ with 0,
        # so padded elements contribute nothing to any accumulated sum.
        # (Zero-padding inp would be wrong: sigmoid(0) == 0.5.)
        inp_r = jnp.pad(inp_r, ((0, 0), (0, 0), (0, pad)),
                        constant_values=-1e30)
        targ_r = jnp.pad(targ_r, ((0, 0), (0, 0), (0, pad)),
                         constant_values=0.0)

    if use_bfloat16:
        # Optional bandwidth saving on this HBM-bound kernel; accumulation
        # inside the kernel stays f32.  Off by default to match f32 semantics.
        inp_r = inp_r.astype(jnp.bfloat16)
        targ_r = targ_r.astype(jnp.bfloat16)

    partials = _per_channel_partials(inp_r, targ_r, hw_tile=hw_tile)  # (N,3,C)
    sums = jnp.sum(partials, axis=0)                                  # (3, C)
    sum_t, sum_tx, sum_x = sums[0], sums[1], sums[2]
    sum_tpx = sum_t + sum_x          # == per-channel sum(targ + sigmoid(inp))

    w = 1.0 / (sum_t ** 2 + 1e-09)
    numerator = jnp.sum(w * sum_tx)
    denominator = jnp.sum(w * sum_tpx)
    dice = 2.0 * (numerator + 1e-09) / (denominator + 1e-09)
    return 1.0 - dice


def _reference(inp, targ):
    # Pure-JAX reference mirroring the PyTorch forward exactly.
    x = jax.nn.sigmoid(inp)
    x = jnp.transpose(x, (0, 2, 3, 1))
    t = jnp.transpose(targ, (0, 2, 3, 1))
    w = 1.0 / (jnp.sum(t, (0, 1, 2)) ** 2 + 1e-09)
    numerator = jnp.sum(w * jnp.sum(t * x, (0, 1, 2)))
    denominator = jnp.sum(w * jnp.sum(t + x, (0, 1, 2)))
    dice = 2.0 * (numerator + 1e-09) / (denominator + 1e-09)
    return 1.0 - dice


if __name__ == "__main__":
    key = jax.random.PRNGKey(0)
    k1, k2 = jax.random.split(key)

    N, C, H, W = 2, 4, 16, 16
    inp = jax.random.normal(k1, (N, C, H, W), dtype=jnp.float32)
    # targ: one-hot-ish binary target, float
    targ = (jax.random.uniform(k2, (N, C, H, W)) > 0.5).astype(jnp.float32)

    loss = jax.block_until_ready(generalized_dice_loss(inp, targ))
    ref = jax.block_until_ready(_reference(inp, targ))
    assert jnp.allclose(loss, ref, atol=1e-5, rtol=1e-5), (loss, ref)

    print("KERNEL_OK")
</pallas_src>

<mosaic_0001>
module attributes {stable_mosaic.version = 11 : i64} {
  func.func @_gdl_sums_kernel(%arg0: i32, %arg1: i32, %arg2: memref<1x4x256xf32, #tpu.memory_space<vmem>>, %arg3: memref<1x4x256xf32, #tpu.memory_space<vmem>>, %arg4: memref<1x3x4xf32, #tpu.memory_space<vmem>>, %arg5: memref<4x256xf32, #tpu.memory_space<vmem>>, %arg6: memref<4x256xf32, #tpu.memory_space<vmem>>, %arg7: memref<4x256xf32, #tpu.memory_space<vmem>>) attributes {dimension_semantics = [#tpu.dimension_semantics<parallel>, #tpu.dimension_semantics<arbitrary>], iteration_bounds = array<i64: 2, 1>, scalar_prefetch = 0 : i64, scratch_operands = 3 : i64, tpu.core_type = #tpu.core_type<tc>, window_params = [{transform_indices = @transform_0, window_bounds = array<i64: 1, 4, 256>}, {transform_indices = @transform_1, window_bounds = array<i64: 1, 4, 256>}, {transform_indices = @transform_2, window_bounds = array<i64: 1, 3, 4>}]} {
    %c0_i32 = arith.constant 0 : i32
    %0 = arith.cmpi eq, %arg1, %c0_i32 : i32
    %1 = arith.extui %0 : i1 to i32
    %c0_i32_0 = arith.constant 0 : i32
    %2 = arith.cmpi ne, %1, %c0_i32_0 : i32
    scf.if %2 {
      %cst_20 = arith.constant 0.000000e+00 : f32
      %25 = vector.broadcast %cst_20 : f32 to vector<4x256xf32>
      %c0_21 = arith.constant 0 : index
      %c0_22 = arith.constant 0 : index
      %26 = vector.load %arg5[%c0_21, %c0_22] : memref<4x256xf32, #tpu.memory_space<vmem>>, vector<4x256xf32>
      tpu.vector_store %arg5[%c0_21, %c0_22], %25 {strides = array<i32>} : memref<4x256xf32, #tpu.memory_space<vmem>>, vector<4x256xf32>,
      %cst_23 = arith.constant 0.000000e+00 : f32
      %27 = vector.broadcast %cst_23 : f32 to vector<4x256xf32>
      %c0_24 = arith.constant 0 : index
      %c0_25 = arith.constant 0 : index
      %28 = vector.load %arg6[%c0_24, %c0_25] : memref<4x256xf32, #tpu.memory_space<vmem>>, vector<4x256xf32>
      tpu.vector_store %arg6[%c0_24, %c0_25], %27 {strides = array<i32>} : memref<4x256xf32, #tpu.memory_space<vmem>>, vector<4x256xf32>,
      %cst_26 = arith.constant 0.000000e+00 : f32
      %29 = vector.broadcast %cst_26 : f32 to vector<4x256xf32>
      %c0_27 = arith.constant 0 : index
      %c0_28 = arith.constant 0 : index
      %30 = vector.load %arg7[%c0_27, %c0_28] : memref<4x256xf32, #tpu.memory_space<vmem>>, vector<4x256xf32>
      tpu.vector_store %arg7[%c0_27, %c0_28], %29 {strides = array<i32>} : memref<4x256xf32, #tpu.memory_space<vmem>>, vector<4x256xf32>,
    } else {
    }
    %c0 = arith.constant 0 : index
    %c0_1 = arith.constant 0 : index
    %c0_2 = arith.constant 0 : index
    %3 = vector.load %arg2[%c0, %c0_1, %c0_2] : memref<1x4x256xf32, #tpu.memory_space<vmem>>, vector<1x4x256xf32>
    %4 = vector.shape_cast %3 : vector<1x4x256xf32> to vector<4x256xf32>
    %5 = arith.negf %4 : vector<4x256xf32>
    %6 = math.exp %5 : vector<4x256xf32>
    %cst = arith.constant 1.000000e+00 : f32
    %7 = vector.broadcast %cst : f32 to vector<4x256xf32>
    %8 = arith.addf %7, %6 : vector<4x256xf32>
    %9 = arith.divf %7, %8 : vector<4x256xf32>
    %c0_3 = arith.constant 0 : index
    %c0_4 = arith.constant 0 : index
    %c0_5 = arith.constant 0 : index
    %10 = vector.load %arg3[%c0_3, %c0_4, %c0_5] : memref<1x4x256xf32, #tpu.memory_space<vmem>>, vector<1x4x256xf32>
    %11 = vector.shape_cast %10 : vector<1x4x256xf32> to vector<4x256xf32>
    %c0_6 = arith.constant 0 : index
    %c0_7 = arith.constant 0 : index
    %12 = vector.load %arg5[%c0_6, %c0_7] : memref<4x256xf32, #tpu.memory_space<vmem>>, vector<4x256xf32>
    %13 = arith.addf %12, %11 : vector<4x256xf32>
    %c0_8 = arith.constant 0 : index
    %c0_9 = arith.constant 0 : index
    %14 = vector.load %arg5[%c0_8, %c0_9] : memref<4x256xf32, #tpu.memory_space<vmem>>, vector<4x256xf32>
    tpu.vector_store %arg5[%c0_8, %c0_9], %13 {strides = array<i32>} : memref<4x256xf32, #tpu.memory_space<vmem>>, vector<4x256xf32>,
    %c0_10 = arith.constant 0 : index
    %c0_11 = arith.constant 0 : index
    %15 = vector.load %arg7[%c0_10, %c0_11] : memref<4x256xf32, #tpu.memory_space<vmem>>, vector<4x256xf32>
    %16 = arith.addf %15, %9 : vector<4x256xf32>
    %c0_12 = arith.constant 0 : index
    %c0_13 = arith.constant 0 : index
    %17 = vector.load %arg7[%c0_12, %c0_13] : memref<4x256xf32, #tpu.memory_space<vmem>>, vector<4x256xf32>
    tpu.vector_store %arg7[%c0_12, %c0_13], %16 {strides = array<i32>} : memref<4x256xf32, #tpu.memory_space<vmem>>, vector<4x256xf32>,
    %c0_14 = arith.constant 0 : index
    %c0_15 = arith.constant 0 : index
    %18 = vector.load %arg6[%c0_14, %c0_15] : memref<4x256xf32, #tpu.memory_space<vmem>>, vector<4x256xf32>
    %19 = arith.mulf %11, %9 : vector<4x256xf32>
    %20 = arith.addf %18, %19 : vector<4x256xf32>
    %c0_16 = arith.constant 0 : index
    %c0_17 = arith.constant 0 : index
    %21 = vector.load %arg6[%c0_16, %c0_17] : memref<4x256xf32, #tpu.memory_space<vmem>>, vector<4x256xf32>
    tpu.vector_store %arg6[%c0_16, %c0_17], %20 {strides = array<i32>} : memref<4x256xf32, #tpu.memory_space<vmem>>, vector<4x256xf32>,
    %c0_i32_18 = arith.constant 0 : i32
    %22 = arith.cmpi eq, %arg1, %c0_i32_18 : i32
    %23 = arith.extui %22 : i1 to i32
    %c0_i32_19 = arith.constant 0 : i32
    %24 = arith.cmpi ne, %23, %c0_i32_19 : i32
    scf.if %24 {
      %c0_20 = arith.constant 0 : index
      %c0_21 = arith.constant 0 : index
      %25 = vector.load %arg5[%c0_20, %c0_21] : memref<4x256xf32, #tpu.memory_space<vmem>>, vector<4x256xf32>
      %cst_22 = arith.constant dense<0.000000e+00> : vector<4xf32>
      %26 = vector.multi_reduction <add>, %25, %cst_22 [1] : vector<4x256xf32> to vector<4xf32>
      %c0_23 = arith.constant 0 : index
      %c0_24 = arith.constant 0 : index
      %27 = vector.load %arg6[%c0_23, %c0_24] : memref<4x256xf32, #tpu.memory_space<vmem>>, vector<4x256xf32>
      %cst_25 = arith.constant dense<0.000000e+00> : vector<4xf32>
      %28 = vector.multi_reduction <add>, %27, %cst_25 [1] : vector<4x256xf32> to vector<4xf32>
      %c0_26 = arith.constant 0 : index
      %c0_27 = arith.constant 0 : index
      %29 = vector.load %arg7[%c0_26, %c0_27] : memref<4x256xf32, #tpu.memory_space<vmem>>, vector<4x256xf32>
      %cst_28 = arith.constant dense<0.000000e+00> : vector<4xf32>
      %30 = vector.multi_reduction <add>, %29, %cst_28 [1] : vector<4x256xf32> to vector<4xf32>
      %31 = vector.shape_cast %26 : vector<4xf32> to vector<1x4xf32>
      %32 = vector.shape_cast %28 : vector<4xf32> to vector<1x4xf32>
      %33 = vector.shape_cast %30 : vector<4xf32> to vector<1x4xf32>
      %34 = tpu.concatenate %31, %32, %33 in 0 : vector<1x4xf32>, vector<1x4xf32>, vector<1x4xf32> -> vector<3x4xf32>
      %c0_29 = arith.constant 0 : index
      %c0_30 = arith.constant 0 : index
      %c0_31 = arith.constant 0 : index
      %35 = vector.load %arg4[%c0_29, %c0_30, %c0_31] : memref<1x3x4xf32, #tpu.memory_space<vmem>>, vector<1x3x4xf32>
      %36 = vector.shape_cast %35 : vector<1x3x4xf32> to vector<3x4xf32>
      %37 = vector.shape_cast %34 : vector<3x4xf32> to vector<1x3x4xf32>
      tpu.vector_store %arg4[%c0_29, %c0_30, %c0_31], %37 {strides = array<i32>} : memref<1x3x4xf32, #tpu.memory_space<vmem>>, vector<1x3x4xf32>,
    } else {
    }
    return
  }
  func.func @transform_0(%arg0: i32, %arg1: i32) -> (i32, i32, i32) {
    %c0_i32 = arith.constant 0 : i32
    %c0_i32_0 = arith.constant 0 : i32
    return %arg0, %c0_i32, %arg1 : i32, i32, i32
  }
  func.func @transform_1(%arg0: i32, %arg1: i32) -> (i32, i32, i32) {
    %c0_i32 = arith.constant 0 : i32
    %c0_i32_0 = arith.constant 0 : i32
    return %arg0, %c0_i32, %arg1 : i32, i32, i32
  }
  func.func @transform_2(%arg0: i32, %arg1: i32) -> (i32, i32, i32) {
    %c0_i32 = arith.constant 0 : i32
    %c0_i32_0 = arith.constant 0 : i32
    %c0_i32_1 = arith.constant 0 : i32
    return %arg0, %c0_i32, %c0_i32_0 : i32, i32, i32
  }
}

</mosaic_0001>

<llo_original>
// kernel: tpu_custom_call.1
$region0: #{tpu_custom_call.1}
  #allocation0 [shape = 'u32[]', space=smem, size = 0x4, offset = 0x4, fixed_abs, tag = 'smem constant byte address 0x4 - core index']
  #allocation1 [shape = 'u32[144,128]{1,0:T(1,128)}', space=vmem, size = 0x12000, scoped, tag = 'internal scratch']
  #allocation2 [shape = 'f32[4,256]{1,0:T(4,128)}', space=vmem, size = 0x1000, scoped, tag = 'scratch operand']
  #allocation3 [shape = 'f32[4,256]{1,0:T(4,128)}', space=vmem, size = 0x1000, scoped, tag = 'scratch operand']
  #allocation4 [shape = 'f32[4,256]{1,0:T(4,128)}', space=vmem, size = 0x1000, scoped, tag = 'scratch operand']
  %s0 = inlined_call_operand.hbm [shape: f32[2,4,256], index: 0, kind: input, shape index: {}]
  %s1 = inlined_call_operand.hbm [shape: f32[2,4,256], index: 1, kind: input, shape index: {}]
  %s2 = inlined_call_operand.vmem [shape: f32[2,3,4], index: 2, kind: output, shape index: {}]
  %s3 = sld [smem:[#allocation0]]
  $region57: #{tpu_custom_call.1} parent=0
    _
  %s5 = ssub.s32 1, %s3
  %s6 = scalar_select 0, %s5, %s3
  $region1: #{tpu_custom_call.1} parent=0
    #allocation5 [shape = 'u8[8192]{0}', space=vmem, size = 0x2000, scoped, tag = 'input window, operand 0']
    #allocation6 [shape = 's32[2]{0}', space=sflag, size = 0x8, scoped, tag = 'scoped memory for tpu_custom_call.1']
    #allocation7 [shape = 'u8[8192]{0}', space=vmem, size = 0x2000, scoped, tag = 'input window, operand 1']
    #allocation8 [shape = 's32[2]{0}', space=sflag, size = 0x8, scoped, tag = 'scoped memory for tpu_custom_call.1']
    %7 = vsyncpa [#allocation6], 0
    %s8 = scalar_lea.sflag [#allocation6], 1
    %9 = vsyncpa %s8, 0
    %10 = vsyncpa [#allocation8], 0
    %s11 = scalar_lea.sflag [#allocation8], 1
    %12 = vsyncpa %s11, 0
    loop: start=0, step=1, limit=4
    $region2: #{tpu_custom_call.1} parent=1 // loop_pre_header
      _
    $region3: #{tpu_custom_call.1} parent=1 // loop_header
      %s14 = sphi 0, %s18
      %p15 = scmp.ge.s32.totalorder %s14, 4
      %s21 = sphi 0, %s33
      %s22 = sphi 0, %s29
      %s23 = sphi 0, %s21
      %s24 = sphi 0, %s22
      %s25 = sphi 0, %s23
      %s26 = sphi 0, %s24
      %s38 = sphi 0, %s40
      %s41 = sphi 0, %s38
      %s42 = sphi 0, %s41
      %s58 = sphi 0, %s42
      %s66 = sphi 0, %s68
      %s69 = sphi 0, %s66
      %s70 = sphi 0, %s69
      %s86 = sphi 0, %s70
      %s92 = sphi 0, %s94
      %s95 = sphi 0, %s92
      %s96 = sphi 0, %s95
      %s112 = sphi 0, %s96
    $region4: #{tpu_custom_call.1} parent=1 // loop_header_branch
      %17 = sbr.rel (%p15) target = $region8
    $region5: #{tpu_custom_call.1} parent=1 // loop_body
      %s19 = ssub.s32 %s14, 1
      %s20 = ssub.s32 %s14, 2
      %s27 = sadd.s32 1, %s22
      %p28 = scmp.ge.s32.totalorder %s27, 1
      %s29 = scalar_select %p28, 0, %s27
      %s30 = sadd.s32 1, %s21
      %s31 = scalar_select %p28, %s30, %s21
      %p32 = scmp.ge.s32.totalorder %s31, 2
      %s33 = scalar_select %p32, 0, %s31
      %s34 = ssub.s32 %s21, %s33
      %s35 = ssub.s32 %s22, %s29
      %s36 = sor.u32 %s34, %s35
      %p37 = scmp.eq.s32.totalorder %s36, 0
      %s39 = sadd.s32 %s38, 1
      %s40 = scalar_select %p37, %s38, %s39
      %p43 = pneg %p37
      %p44 = scmp.eq.s32.totalorder %s14, 1
      %p45 = por %p43, %p44
      %p46 = scmp.ne.s32.totalorder %s38, %s41
      %p47 = scmp.eq.s32.totalorder %s14, 0
      %p48 = por %p46, %p47
      %p49 = scmp.ne.s32.totalorder %s38, %s41
      %p50 = scmp.eq.s32.totalorder %s19, 1
      %p51 = por %p49, %p50
      %p52 = scmp.ne.s32.totalorder %s41, %s42
      %p53 = scmp.eq.s32.totalorder %s19, 0
      %p54 = por %p52, %p53
      %p55 = scmp.ne.s32.totalorder %s41, %s42
      %p56 = scmp.eq.s32.totalorder %s20, 1
      %p57 = por %p55, %p56
      %p59 = scmp.ne.s32.totalorder %s42, %s58
      %p60 = scmp.eq.s32.totalorder %s20, 0
      %p61 = por %p59, %p60
      %s62 = ssub.s32 %s21, %s33
      %s63 = ssub.s32 %s22, %s29
      %s64 = sor.u32 %s62, %s63
      %p65 = scmp.eq.s32.totalorder %s64, 0
      %s67 = sadd.s32 %s66, 1
      %s68 = scalar_select %p65, %s66, %s67
      %p71 = pneg %p65
      %p72 = scmp.eq.s32.totalorder %s14, 1
      %p73 = por %p71, %p72
      %p74 = scmp.ne.s32.totalorder %s66, %s69
      %p75 = scmp.eq.s32.totalorder %s14, 0
      %p76 = por %p74, %p75
      %p77 = scmp.ne.s32.totalorder %s66, %s69
      %p78 = scmp.eq.s32.totalorder %s19, 1
      %p79 = por %p77, %p78
      %p80 = scmp.ne.s32.totalorder %s69, %s70
      %p81 = scmp.eq.s32.totalorder %s19, 0
      %p82 = por %p80, %p81
      %p83 = scmp.ne.s32.totalorder %s69, %s70
      %p84 = scmp.eq.s32.totalorder %s20, 1
      %p85 = por %p83, %p84
      %p87 = scmp.ne.s32.totalorder %s70, %s86
      %p88 = scmp.eq.s32.totalorder %s20, 0
      %p89 = por %p87, %p88
      %s90 = ssub.s32 %s21, %s33
      %p91 = scmp.eq.s32.totalorder %s90, 0
      %s93 = sadd.s32 %s92, 1
      %s94 = scalar_select %p91, %s92, %s93
      %p97 = pneg %p91
      %p98 = scmp.eq.s32.totalorder %s14, 1
      %p99 = por %p97, %p98
      %p100 = scmp.ne.s32.totalorder %s92, %s95
      %p101 = scmp.eq.s32.totalorder %s14, 0
      %p102 = por %p100, %p101
      %p103 = scmp.ne.s32.totalorder %s92, %s95
      %p104 = scmp.eq.s32.totalorder %s19, 1
      %p105 = por %p103, %p104
      %p106 = scmp.ne.s32.totalorder %s95, %s96
      %p107 = scmp.eq.s32.totalorder %s19, 0
      %p108 = por %p106, %p107
      %p109 = scmp.ne.s32.totalorder %s95, %s96
      %p110 = scmp.eq.s32.totalorder %s20, 1
      %p111 = por %p109, %p110
      %p113 = scmp.ne.s32.totalorder %s96, %s112
      %p114 = scmp.eq.s32.totalorder %s20, 0
      %p115 = por %p113, %p114
      %p116 = scmp.le.s32.totalorder 1, %s14
      %p117 = scmp.lt.s32.totalorder %s14, 3
      %p118 = pnand %p116, %p117
      %p119 = pneg %p118
      // Predicated region
      $region9: #{tpu_custom_call.1} parent=5 // pred_check
        _
      $region10: #{tpu_custom_call.1} parent=5 // pred_check_branch
        %121 = sbr.rel (%p118) target = $region12
      $region11: #{tpu_custom_call.1} parent=5 // pred_region
        %s122 = ssub.s32 %s14, 1
      $region12: #{tpu_custom_call.1} parent=5 // pred_fallthru
        _
      %p123 = scmp.lt.s32.totalorder %s14, 2
      // Predicated region
      $region13: #{tpu_custom_call.1} parent=5 // pred_check
        %p124 = pneg %p123
      $region14: #{tpu_custom_call.1} parent=5 // pred_check_branch
        %126 = sbr.rel (%p124) target = $region16
      $region15: #{tpu_custom_call.1} parent=5 // pred_region
        // Predicated region
        $region17: #{tpu_custom_call.1} parent=15 // pred_check
          %p127 = pneg %p48
        $region18: #{tpu_custom_call.1} parent=15 // pred_check_branch
          %129 = sbr.rel (%p127) target = $region20
        $region19: #{tpu_custom_call.1} parent=15 // pred_region
          %s130 = sand.u32 %s38, 1
          %s131 = scalar_lea.sflag [#allocation6], %s130
          %s132 = sand.u32 %s38, 1
          %s133 = smul.addr %s132, 8
          %s134 = scalar_lea.vmem [#allocation5], %s133
          %s135 = smul.u32 2, %s22
          %s137 = ssub.s32 128, 128
          %138 = vsyncadd %s131, %s137
          %s139 = smul.addr %s21, 2
          %s140 = sadd.s32 %s135, %s139
          %s141 = smul.addr %s140, 64
          %s142 = scalar_lea.hbm %s0, %s141
          %s144 = sshll.u32 %s134, 4
          %s145 = int_to_ptr.vmem [resolvable:$true] %s144
          %147 = dma.hbm_to_vmem [thread:$0]  %s142, 128, %s145, %s131
        $region20: #{tpu_custom_call.1} parent=15 // pred_fallthru
          _
        // Predicated region
        $region21: #{tpu_custom_call.1} parent=15 // pred_check
          %p148 = pneg %p76
        $region22: #{tpu_custom_call.1} parent=15 // pred_check_branch
          %150 = sbr.rel (%p148) target = $region24
        $region23: #{tpu_custom_call.1} parent=15 // pred_region
          %s151 = sand.u32 %s66, 1
          %s152 = scalar_lea.sflag [#allocation8], %s151
          %s153 = sand.u32 %s66, 1
          %s154 = smul.addr %s153, 8
          %s155 = scalar_lea.vmem [#allocation7], %s154
          %s156 = smul.u32 2, %s22
          %s158 = ssub.s32 128, 128
          %159 = vsyncadd %s152, %s158
          %s160 = smul.addr %s21, 2
          %s161 = sadd.s32 %s156, %s160
          %s162 = smul.addr %s161, 64
          %s163 = scalar_lea.hbm %s1, %s162
          %s165 = sshll.u32 %s155, 4
          %s166 = int_to_ptr.vmem [resolvable:$true] %s165
          %168 = dma.hbm_to_vmem [thread:$0]  %s163, 128, %s166, %s152
        $region24: #{tpu_custom_call.1} parent=15 // pred_fallthru
          _
      $region16: #{tpu_custom_call.1} parent=5 // pred_fallthru
        _
      %p169 = scmp.le.s32.totalorder 1, %s14
      %p170 = scmp.lt.s32.totalorder %s14, 3
      %p171 = pnand %p169, %p170
      %p172 = pneg %p171
      // Predicated region
      $region25: #{tpu_custom_call.1} parent=5 // pred_check
        _
      $region26: #{tpu_custom_call.1} parent=5 // pred_check_branch
        %174 = sbr.rel (%p171) target = $region28
      $region27: #{tpu_custom_call.1} parent=5 // pred_region
        %s175 = ssub.s32 %s14, 1
        %s176 = sand.u32 %s41, 1
        %s177 = scalar_lea.sflag [#allocation6], %s176
        %s178 = sand.u32 %s41, 1
        %s179 = smul.addr %s178, 8
        %s180 = scalar_lea.vmem [#allocation5], %s179
        // Predicated region
        $region29: #{tpu_custom_call.1} parent=27 // pred_check
          %p181 = pneg %p54
        $region30: #{tpu_custom_call.1} parent=27 // pred_check_branch
          %183 = sbr.rel (%p181) target = $region32
        $region31: #{tpu_custom_call.1} parent=27 // pred_region
          %184 = dma.done %s177, 128
        $region32: #{tpu_custom_call.1} parent=27 // pred_fallthru
          _
        %s185 = sand.u32 %s69, 1
        %s186 = scalar_lea.sflag [#allocation8], %s185
        %s187 = sand.u32 %s69, 1
        %s188 = smul.addr %s187, 8
        %s189 = scalar_lea.vmem [#allocation7], %s188
        // Predicated region
        $region33: #{tpu_custom_call.1} parent=27 // pred_check
          %p190 = pneg %p82
        $region34: #{tpu_custom_call.1} parent=27 // pred_check_branch
          %192 = sbr.rel (%p190) target = $region36
        $region35: #{tpu_custom_call.1} parent=27 // pred_region
          %193 = dma.done %s186, 128
        $region36: #{tpu_custom_call.1} parent=27 // pred_fallthru
          _
        %s194 = sand.u32 %s41, 1
        %s195 = scalar_lea.sflag [#allocation6], %s194
        %s196 = sand.u32 %s41, 1
        %s197 = smul.addr %s196, 8
        %s198 = scalar_lea.vmem [#allocation5], %s197
        %p199 = pneg %p54
        %p200 = pneg %p51
        %s201 = sand.u32 %s69, 1
        %s202 = scalar_lea.sflag [#allocation8], %s201
        %s203 = sand.u32 %s69, 1
        %s204 = smul.addr %s203, 8
        %s205 = scalar_lea.vmem [#allocation7], %s204
        %p206 = pneg %p82
        %p207 = pneg %p79
        %p208 = pneg %p108
        %p209 = pneg %p105
        %p210 = scmp.lt.s32.totalorder %s23, 1
        %s211 = scalar_select %p210, %s23, 1
        %s212 = smul.addr %s211, 4
        %s213 = scalar_lea.vmem %s2, %s212
        %s214 = smul.u32 2, %s24
        %s215 = smul.u32 2, %s24
        %p216 = scmp.lt.s32.totalorder %s23, 1
        %s217 = scalar_select %p216, %s23, 1
        %s218 = smul.addr %s217, 4
        %s219 = scalar_lea.vmem %s2, %s218
        %p220 = scmp.eq.s32.totalorder %s24, 0
        // Predicated region
        $region37: #{tpu_custom_call.1} parent=27 // pred_check
          %p221 = pneg %p220
        $region38: #{tpu_custom_call.1} parent=27 // pred_check_branch
          %223 = sbr.rel (%p221) target = $region40
        $region39: #{tpu_custom_call.1} parent=27 // pred_region
          %224 = vst [vmem:[#allocation2] sm:$0xff] 0.0
          %225 = vst [vmem:[#allocation3] sm:$0xff] 0.0
          %226 = vst [vmem:[#allocation4] sm:$0xff] 0.0
        $region40: #{tpu_custom_call.1} parent=27 // pred_fallthru
          _
        %v227 = vld [vmem:[%s180] sm:$0xff]
        %v228 = vxor.u32 %v227, 2147483648
        %v229 = vmul.f32 %v228, 1.442695
        %v230 = vpow.pop %v229
        %v231 = vadd.f32 %v230, 1.0
        %v232 = vrcp.pop %v231
        %v233 = vmul.f32 1.0, %v232
        %v234 = vld [vmem:[%s189] sm:$0xff]
        %v235 = vld [vmem:[#allocation2] sm:$0xff]
        %v236 = vadd.f32 %v235, %v234
        %237 = vst [vmem:[#allocation2] sm:$0xff] %v236
        %v238 = vld [vmem:[#allocation4] sm:$0xff]
        %v239 = vadd.f32 %v238, %v233
        %240 = vst [vmem:[#allocation4] sm:$0xff] %v239
        %v241 = vld [vmem:[#allocation3] sm:$0xff]
        %v242 = vmul.f32 %v234, %v233
        %v243 = vadd.f32 %v241, %v242
        %244 = vst [vmem:[#allocation3] sm:$0xff] %v243
        // Predicated region
        $region41: #{tpu_custom_call.1} parent=27 // pred_check
          %p245 = pneg %p220
        $region42: #{tpu_custom_call.1} parent=27 // pred_check_branch
          %247 = sbr.rel (%p245) target = $region44
        $region43: #{tpu_custom_call.1} parent=27 // pred_region
          %v248 = vld [vmem:[#allocation2] sm:$0xff]
          %v250 = vcombine.high %v248, %v248
          %vm252 = vcmask 1043456
          %v253 = vsel %vm252, %v248, 0.0
          %v254 = vsel %vm252, %v250, 0.0
          %v255 = vadd.f32 %v253, %v254
          %256 = vadd.xlane.f32.xlu0 %v255
          %v257 = vpop.xlane.xlu0 %256
          %v258 = vld [vmem:[#allocation3] sm:$0xff]
          %v260 = vcombine.high %v258, %v258
          %v262 = vsel %vm252, %v258, 0.0
          %v263 = vsel %vm252, %v260, 0.0
          %v264 = vadd.f32 %v262, %v263
          %265 = vadd.xlane.f32.xlu0 %v264
          %v266 = vpop.xlane.xlu0 %265
          %v267 = vld [vmem:[#allocation4] sm:$0xff]
          %v269 = vcombine.high %v267, %v267
          %v271 = vsel %vm252, %v267, 0.0
          %v272 = vsel %vm252, %v269, 0.0
          %v273 = vadd.f32 %v271, %v272
          %274 = vadd.xlane.f32.xlu0 %v273
          %v275 = vpop.xlane.xlu0 %274
          %v277 = vlaneseq
          %v278 = vand.u32 %v277, 127
          %v279 = vlaneseq
          %v280 = vshrl.u32 %v279, 7
          %v281 = vsub.s32 %v278, %v280
          %v282 = vrot.slane %v257, %v281
          %v285 = vlaneseq
          %v286 = vshrl.u32 %v285, 7
          %v287 = vsub.s32 %v278, %v286
          %v288 = vrot.slane %v266, %v287
          %v291 = vlaneseq
          %v292 = vshrl.u32 %v291, 7
          %v293 = vsub.s32 %v278, %v292
          %v294 = vrot.slane %v275, %v293
          %vm296 = vcmask 1040384
          %v297 = vsel %vm296, %v282, %v288
          %vm298 = vcmask 1041408
          %v299 = vsel %vm298, %v297, %v294
          %vm300 = vcmask 26624
          %301 = vst.msk [vmem:[%s219] sm:$0x7] %vm300, %v299
        $region44: #{tpu_custom_call.1} parent=27 // pred_fallthru
          _
        %p302 = scmp.lt.s32.totalorder %s23, 1
        %s303 = scalar_select %p302, %s23, 1
        %s304 = smul.addr %s303, 4
        %s305 = scalar_lea.vmem %s2, %s304
        // Predicated region
        $region45: #{tpu_custom_call.1} parent=27 // pred_check
          %p306 = pneg %p105
        $region46: #{tpu_custom_call.1} parent=27 // pred_check_branch
          %308 = sbr.rel (%p306) target = $region48
        $region47: #{tpu_custom_call.1} parent=27 // pred_region
          _
        $region48: #{tpu_custom_call.1} parent=27 // pred_fallthru
          _
      $region28: #{tpu_custom_call.1} parent=5 // pred_fallthru
        _
      %p309 = scmp.le.s32.totalorder 2, %s14
      // Predicated region
      $region49: #{tpu_custom_call.1} parent=5 // pred_check
        %p310 = pneg %p309
      $region50: #{tpu_custom_call.1} parent=5 // pred_check_branch
        %312 = sbr.rel (%p310) target = $region52
      $region51: #{tpu_custom_call.1} parent=5 // pred_region
        %s313 = ssub.s32 %s14, 2
        // Predicated region
        $region53: #{tpu_custom_call.1} parent=51 // pred_check
          %p314 = pneg %p111
        $region54: #{tpu_custom_call.1} parent=51 // pred_check_branch
          %316 = sbr.rel (%p314) target = $region56
        $region55: #{tpu_custom_call.1} parent=51 // pred_region
          %p317 = scmp.lt.s32.totalorder %s25, 1
          %s318 = scalar_select %p317, %s25, 1
          %s319 = smul.addr %s318, 4
          %s320 = scalar_lea.vmem %s2, %s319
        $region56: #{tpu_custom_call.1} parent=51 // pred_fallthru
          _
      $region52: #{tpu_custom_call.1} parent=5 // pred_fallthru
        _
    $region6: #{tpu_custom_call.1} parent=1 // loop_footer
      %s18 = sadd.s32 1, %s14
    $region7: #{tpu_custom_call.1} parent=1 // loop_footer_branch
      %13 = sbr.rel target = $region3
    $region8: #{tpu_custom_call.1} parent=1 // loop_exit
      _
    %321 = vsyncpa [#allocation6], 1
    %s322 = scalar_lea.sflag [#allocation6], 1
    %323 = vsyncpa %s322, 1
    %324 = vsyncpa [#allocation8], 1
    %s325 = scalar_lea.sflag [#allocation8], 1
    %326 = vsyncpa %s325, 1

</llo_original>
